<compile_context>
chip_gen: v5e
topology: v5e:2x2
jax: 0.10.0
libtpu: 0.0.40
codegen_flags: <defaults>
</compile_context>

<pallas_src>
import jax
import jax.numpy as jnp
from jax.experimental import pallas as pl
from jax.experimental.pallas import tpu as pltpu


# ----------------------------- kernels --------------------------------------


def _mlp_kernel_out1(x_ref, w1_ref, b1_ref, w2_ref, b2_ref, o_ref):
    # x: (TB, D_in)  w1: (D_in, H)  b1: (1, H)  w2: (1, H)  b2: (1,) in SMEM
    x = x_ref[...].astype(w1_ref.dtype)            # no-op for f32 weights
    h = jnp.dot(x, w1_ref[...], preferred_element_type=jnp.float32)
    h = jnp.maximum(h + b1_ref[...].astype(jnp.float32), 0.0)      # ReLU (VPU, f32)
    # output_size == 1: an N=1 MXU matmul wastes a full result column, so use a
    # VPU broadcast-multiply + XLU lane reduce; bias is a free SMEM scalar read.
    z = jnp.sum(h * w2_ref[...].astype(jnp.float32), axis=-1, keepdims=True)
    o_ref[...] = jax.nn.sigmoid(z + b2_ref[0]).astype(o_ref.dtype)  # EUP sigmoid


def _mlp_kernel_general(x_ref, w1_ref, b1_ref, w2_ref, b2_ref, o_ref):
    # General output_size: both layers on the MXU.  w2 is pre-transposed to
    # (H, OUT) and b2 pre-reshaped to (1, OUT), so both dots are plain (K, N)
    # and there is zero per-step relayout work.
    x = x_ref[...].astype(w1_ref.dtype)
    h = jnp.dot(x, w1_ref[...], preferred_element_type=jnp.float32)
    h = jnp.maximum(h + b1_ref[...].astype(jnp.float32), 0.0)
    z = jnp.dot(h.astype(w2_ref.dtype), w2_ref[...],
                preferred_element_type=jnp.float32)
    z = z + b2_ref[...].astype(jnp.float32)
    o_ref[...] = jax.nn.sigmoid(z).astype(o_ref.dtype)


# -------------------------- parameter prep ----------------------------------


def prepare_params(w1, b1, w2, b2, *, weights_dtype=jnp.float32):
    """One-time conversion from PyTorch nn.Linear layout to kernel layout.

    w1: (H, D_in) -> (D_in, H)          first matmul is x @ W, MXU-native (K, N)
    b1: (H,)      -> (1, H)  f32
    w2: (OUT, H)  -> OUT==1: (1, H)     row for the VPU multiply + lane reduce
                     OUT>1 : (H, OUT)   second matmul also MXU-native (K, N)
    b2: (OUT,)    -> OUT==1: (1,) f32   SMEM scalar
                     OUT>1 : (1, OUT) f32 row

    weights_dtype=jnp.bfloat16 is worthwhile on v6e/v7x at non-toy layer sizes
    (halves resident weight VMEM, bf16 MXU); biases/accumulation stay f32.
    """
    out_size = w2.shape[0]
    w1_t = jnp.transpose(w1).astype(weights_dtype)
    b1_row = b1.reshape(1, -1).astype(jnp.float32)
    if out_size == 1:
        w2_p = w2.reshape(1, -1).astype(weights_dtype)
        b2_p = b2.reshape(1).astype(jnp.float32)
    else:
        w2_p = jnp.transpose(w2).astype(weights_dtype)
        b2_p = b2.reshape(1, -1).astype(jnp.float32)
    return (w1_t, b1_row, w2_p, b2_p)


# ------------------------------ wrapper -------------------------------------

_VMEM_BUDGET_BYTES = 16 * 1024 * 1024   # data budget, safe on every chip
_VMEM_LIMIT_BYTES = 32 * 1024 * 1024    # scoped limit (v5e default is only 16 MiB)
_MAX_BATCH_TILE = 8192


def _pick_batch_tile(batch, d_in, hidden, out_size, x_bytes, w_bytes):
    """Biggest sublane-aligned batch tile that keeps the pipelined streams plus
    the single-buffered resident weights inside the VMEM budget."""
    weight_bytes = (d_in * hidden + out_size * hidden) * w_bytes \
        + (hidden + out_size) * 4
    per_row = (2 * d_in * x_bytes        # double-buffered x tile
               + 2 * out_size * 4        # double-buffered out tile (f32)
               + hidden * 4)             # f32 hidden activations
    avail = max(_VMEM_BUDGET_BYTES - weight_bytes, 8 * per_row)
    tb = min(avail // per_row, _MAX_BATCH_TILE)
    tb = max(8, (tb // 8) * 8)
    if batch <= tb:
        return batch                     # block == full dim is always legal
    return tb


def binary_classification_forward(x, params):
    """Fused forward pass of BinaryClassificationNeuralNet.

    x      : (B, input_size)
    params : output of prepare_params()
    returns: (B, output_size) float32
    """
    w1_t, b1_row, w2_p, b2_p = params
    batch, d_in = x.shape
    hidden = w1_t.shape[1]
    out_size = 1 if w2_p.shape[0] == 1 and b2_p.ndim == 1 else w2_p.shape[1]

    tb = _pick_batch_tile(batch, d_in, hidden, out_size,
                          x.dtype.itemsize, w1_t.dtype.itemsize)
    grid = (pl.cdiv(batch, tb),)

    # Weights/biases have a constant index_map -> single-buffer them; the VMEM
    # saved goes to the batch tile instead.
    def resident(shape):
        return pl.BlockSpec(shape, lambda i: (0,) * len(shape),
                            pipeline_mode=pl.Buffered(1))

    if out_size == 1:
        kernel = _mlp_kernel_out1
        w2_spec = resident((1, hidden))
        b2_spec = pl.BlockSpec(memory_space=pltpu.MemorySpace.SMEM)
    else:
        kernel = _mlp_kernel_general
        w2_spec = resident((hidden, out_size))
        b2_spec = resident((1, out_size))

    cost = pl.CostEstimate(
        flops=2 * batch * (d_in * hidden + hidden * out_size),
        transcendentals=batch * out_size,   # sigmoid
        bytes_accessed=(x.dtype.itemsize * batch * d_in
                        + w1_t.dtype.itemsize * (d_in * hidden + out_size * hidden)
                        + 4 * (hidden + out_size)
                        + 4 * batch * out_size),
    )

    return pl.pallas_call(
        kernel,
        out_shape=jax.ShapeDtypeStruct((batch, out_size), jnp.float32),
        grid=grid,
        in_specs=[
            pl.BlockSpec((tb, d_in), lambda i: (i, 0)),   # x tile (pipelined)
            resident((d_in, hidden)),                     # w1_t resident
            resident((1, hidden)),                        # b1 row resident
            w2_spec,                                      # w2 resident
            b2_spec,                                      # b2
        ],
        out_specs=pl.BlockSpec((tb, out_size), lambda i: (i, 0)),
        compiler_params=pltpu.CompilerParams(
            # Batch axis is independent -> shard grid steps across TensorCores
            # (v7x has 2 TCs/chip).
            dimension_semantics=("parallel",),
            vmem_limit_bytes=_VMEM_LIMIT_BYTES,
        ),
        cost_estimate=cost,
    )(x, w1_t, b1_row, w2_p, b2_p)


# ------------------------------- demo ---------------------------------------


def init_params(key, input_size, hidden_size, output_size):
    """Deterministic PyTorch-style (uniform +/- 1/sqrt(fan_in)) init."""
    k1, k2, k3, k4 = jax.random.split(key, 4)
    bound1 = 1.0 / (input_size ** 0.5)
    bound2 = 1.0 / (hidden_size ** 0.5)
    w1 = jax.random.uniform(k1, (hidden_size, input_size), jnp.float32,
                            -bound1, bound1)
    b1 = jax.random.uniform(k2, (hidden_size,), jnp.float32, -bound1, bound1)
    w2 = jax.random.uniform(k3, (output_size, hidden_size), jnp.float32,
                            -bound2, bound2)
    b2 = jax.random.uniform(k4, (output_size,), jnp.float32, -bound2, bound2)
    return w1, b1, w2, b2


def _reference(x, w1, b1, w2, b2):
    return jax.nn.sigmoid(jnp.maximum(x @ w1.T + b1, 0.0) @ w2.T + b2)


if __name__ == "__main__":
    key = jax.random.PRNGKey(0)
    kx, kp, kp2 = jax.random.split(key, 3)

    batch, input_size, hidden_size, output_size = 8, 16, 32, 1

    x = jax.random.normal(kx, (batch, input_size), jnp.float32)
    w1, b1, w2, b2 = init_params(kp, input_size, hidden_size, output_size)

    # One-time parameter preparation (kept out of the per-call path).
    params = prepare_params(w1, b1, w2, b2)

    out = binary_classification_forward(x, params)
    out = jax.block_until_ready(out)

    ref = _reference(x, w1, b1, w2, b2)
    assert out.shape == (batch, output_size)
    assert jnp.allclose(out, ref, atol=1e-5, rtol=1e-5)

    # Also exercise the general (output_size > 1) MXU path.
    w1g, b1g, w2g, b2g = init_params(kp2, input_size, hidden_size, 4)
    params_g = prepare_params(w1g, b1g, w2g, b2g)
    out_g = jax.block_until_ready(binary_classification_forward(x, params_g))
    ref_g = _reference(x, w1g, b1g, w2g, b2g)
    assert out_g.shape == (batch, 4)
    assert jnp.allclose(out_g, ref_g, atol=1e-5, rtol=1e-5)

    print("KERNEL_OK")
</pallas_src>

<mosaic_0001>
module attributes {stable_mosaic.version = 11 : i64} {
  func.func @_mlp_kernel_out1(%arg0: i32, %arg1: memref<8x16xf32, #tpu.memory_space<vmem>>, %arg2: memref<16x32xf32, #tpu.memory_space<vmem>>, %arg3: memref<1x32xf32, #tpu.memory_space<vmem>>, %arg4: memref<1x32xf32, #tpu.memory_space<vmem>>, %arg5: memref<1xf32, #tpu.memory_space<smem>>, %arg6: memref<8x1xf32, #tpu.memory_space<vmem>>) attributes {dimension_semantics = [#tpu.dimension_semantics<parallel>], iteration_bounds = array<i64: 1>, scalar_prefetch = 0 : i64, scratch_operands = 0 : i64, tpu.core_type = #tpu.core_type<tc>, window_params = [{transform_indices = @transform_0, window_bounds = array<i64: 8, 16>}, {pipeline_mode = #tpu.pipeline_mode<synchronous>, transform_indices = @transform_1, window_bounds = array<i64: 16, 32>}, {pipeline_mode = #tpu.pipeline_mode<synchronous>, transform_indices = @transform_2, window_bounds = array<i64: 1, 32>}, {pipeline_mode = #tpu.pipeline_mode<synchronous>, transform_indices = @transform_3, window_bounds = array<i64: 1, 32>}, {transform_indices = @transform_4, window_bounds = array<i64: 1>}, {transform_indices = @transform_5, window_bounds = array<i64: 8, 1>}]} {
    %c0 = arith.constant 0 : index
    %c0_0 = arith.constant 0 : index
    %0 = vector.load %arg1[%c0, %c0_0] : memref<8x16xf32, #tpu.memory_space<vmem>>, vector<8x16xf32>
    %c0_1 = arith.constant 0 : index
    %c0_2 = arith.constant 0 : index
    %1 = vector.load %arg2[%c0_1, %c0_2] : memref<16x32xf32, #tpu.memory_space<vmem>>, vector<16x32xf32>
    %cst = arith.constant dense<0.000000e+00> : vector<8x32xf32>
    %2 = tpu.matmul %0, %1, %cst {dimension_numbers = #tpu.dot_dimension_numbers<[1], [0], [0], [1], [0, 0, 1, 1], [], []>} : vector<8x16xf32>, vector<16x32xf32>, vector<8x32xf32> -> vector<8x32xf32>
    %c0_3 = arith.constant 0 : index
    %c0_4 = arith.constant 0 : index
    %3 = vector.load %arg3[%c0_3, %c0_4] : memref<1x32xf32, #tpu.memory_space<vmem>>, vector<1x32xf32>
    %4 = vector.broadcast %3 : vector<1x32xf32> to vector<8x32xf32>
    %5 = arith.addf %2, %4 : vector<8x32xf32>
    %cst_5 = arith.constant 0.000000e+00 : f32
    %6 = vector.broadcast %cst_5 : f32 to vector<8x32xf32>
    %7 = arith.maximumf %5, %6 : vector<8x32xf32>
    %c0_6 = arith.constant 0 : index
    %c0_7 = arith.constant 0 : index
    %8 = vector.load %arg4[%c0_6, %c0_7] : memref<1x32xf32, #tpu.memory_space<vmem>>, vector<1x32xf32>
    %9 = vector.broadcast %8 : vector<1x32xf32> to vector<8x32xf32>
    %10 = arith.mulf %7, %9 : vector<8x32xf32>
    %cst_8 = arith.constant dense<0.000000e+00> : vector<8xf32>
    %11 = vector.multi_reduction <add>, %10, %cst_8 [1] : vector<8x32xf32> to vector<8xf32>
    %12 = vector.shape_cast %11 : vector<8xf32> to vector<8x1xf32>
    %c0_9 = arith.constant 0 : index
    %13 = memref.load %arg5[%c0_9] : memref<1xf32, #tpu.memory_space<smem>>
    %14 = vector.broadcast %13 : f32 to vector<8x1xf32>
    %15 = arith.addf %12, %14 : vector<8x1xf32>
    %16 = arith.negf %15 : vector<8x1xf32>
    %17 = math.exp %16 : vector<8x1xf32>
    %cst_10 = arith.constant 1.000000e+00 : f32
    %18 = vector.broadcast %cst_10 : f32 to vector<8x1xf32>
    %19 = arith.addf %18, %17 : vector<8x1xf32>
    %20 = arith.divf %18, %19 : vector<8x1xf32>
    %c0_11 = arith.constant 0 : index
    %c0_12 = arith.constant 0 : index
    %21 = vector.load %arg6[%c0_11, %c0_12] : memref<8x1xf32, #tpu.memory_space<vmem>>, vector<8x1xf32>
    tpu.vector_store %arg6[%c0_11, %c0_12], %20 {strides = array<i32>} : memref<8x1xf32, #tpu.memory_space<vmem>>, vector<8x1xf32>,
    return
  }
  func.func @transform_0(%arg0: i32) -> (i32, i32) {
    %c0_i32 = arith.constant 0 : i32
    %c0_i32_0 = arith.constant 0 : i32
    return %arg0, %c0_i32 : i32, i32
  }
  func.func @transform_1(%arg0: i32) -> (i32, i32) {
    %c0_i32 = arith.constant 0 : i32
    %c0_i32_0 = arith.constant 0 : i32
    %c0_i32_1 = arith.constant 0 : i32
    return %c0_i32, %c0_i32_0 : i32, i32
  }
  func.func @transform_2(%arg0: i32) -> (i32, i32) {
    %c0_i32 = arith.constant 0 : i32
    %c0_i32_0 = arith.constant 0 : i32
    %c0_i32_1 = arith.constant 0 : i32
    return %c0_i32, %c0_i32_0 : i32, i32
  }
  func.func @transform_3(%arg0: i32) -> (i32, i32) {
    %c0_i32 = arith.constant 0 : i32
    %c0_i32_0 = arith.constant 0 : i32
    %c0_i32_1 = arith.constant 0 : i32
    return %c0_i32, %c0_i32_0 : i32, i32
  }
  func.func @transform_4(%arg0: i32) -> i32 {
    %c0_i32 = arith.constant 0 : i32
    %c0_i32_0 = arith.constant 0 : i32
    return %c0_i32 : i32
  }
  func.func @transform_5(%arg0: i32) -> (i32, i32) {
    %c0_i32 = arith.constant 0 : i32
    %c0_i32_0 = arith.constant 0 : i32
    return %arg0, %c0_i32 : i32, i32
  }
}

</mosaic_0001>

<llo_original>
// kernel: tpu_custom_call.1
$region0: #{tpu_custom_call.1}
  #allocation0 [shape = 'u32[]', space=smem, size = 0x4, offset = 0x4, fixed_abs, tag = 'smem constant byte address 0x4 - core index']
  #allocation1 [shape = 'u32[72,128]{1,0:T(1,128)}', space=vmem, size = 0x9000, scoped, tag = 'internal scratch']
  #allocation2 [shape = 'f32[1]{0:T(128)S(6)}', space=smem, size = 0x200, scoped, tag = 'scoped memory for tpu_custom_call.1']
  %s0 = inlined_call_operand.hbm [shape: f32[8,16], index: 0, kind: input, shape index: {}]
  %s1 = inlined_call_operand.hbm [shape: f32[16,32], index: 1, kind: input, shape index: {}]
  %s2 = inlined_call_operand.vmem [shape: f32[1,32], index: 2, kind: input, shape index: {}]
  %s3 = inlined_call_operand.vmem [shape: f32[1,32], index: 3, kind: input, shape index: {}]
  %s4 = inlined_call_operand.<no memory space> [shape: f32[1], index: 4, kind: input, shape index: {}]
  %s5 = inlined_call_operand.vmem [shape: f32[8,1], index: 5, kind: output, shape index: {}]
  %s6 = sld [smem:[#allocation0]]
  $region38: #{tpu_custom_call.1} parent=0
    _
  %s8 = ssub.s32 1, %s6
  %s9 = scalar_select 0, %s8, %s6
  %10 = sst [smem:[#allocation2]] %s4
  $region1: #{tpu_custom_call.1} parent=0
    #allocation3 [shape = 'u8[4096]{0}', space=vmem, size = 0x1000, scoped, tag = 'input window, operand 0, single buffered']
    #allocation4 [shape = 's32[1]{0}', space=sflag, size = 0x4, scoped, tag = 'scoped memory for tpu_custom_call.1']
    #allocation5 [shape = 'u8[8192]{0}', space=vmem, size = 0x2000, scoped, tag = 'input window, operand 1, single buffered']
    #allocation6 [shape = 's32[1]{0}', space=sflag, size = 0x4, scoped, tag = 'scoped memory for tpu_custom_call.1']
    %11 = vsyncpa [#allocation4], 0
    %12 = vsyncpa [#allocation6], 0
    // Predicated region
    $region2: #{tpu_custom_call.1} parent=1 // pred_check
      _
    $region3: #{tpu_custom_call.1} parent=1 // pred_check_branch
      %14 = sbr.rel (0) target = $region5
    $region4: #{tpu_custom_call.1} parent=1 // pred_region
      %16 = vsyncadd [#allocation4], 0
      %s18 = sshll.u32 %s0, 4
      %s19 = int_to_ptr.hbm [resolvable:$true] %s18
      %s20 = sshll.u32 [#allocation3], 4
      %s21 = int_to_ptr.vmem [resolvable:$true] %s20
      %23 = dma.hbm_to_vmem [thread:$0]  %s19, 128, %s21, [#allocation4]
    $region5: #{tpu_custom_call.1} parent=1 // pred_fallthru
      _
    // Predicated region
    $region6: #{tpu_custom_call.1} parent=1 // pred_check
      _
    $region7: #{tpu_custom_call.1} parent=1 // pred_check_branch
      %25 = sbr.rel (0) target = $region9
    $region8: #{tpu_custom_call.1} parent=1 // pred_region
      %27 = vsyncadd [#allocation6], 0
      %s28 = sshll.u32 %s1, 4
      %s29 = int_to_ptr.hbm [resolvable:$true] %s28
      %s30 = sshll.u32 [#allocation5], 4
      %s31 = int_to_ptr.vmem [resolvable:$true] %s30
      %36 = dma.hbm_to_vmem [thread:$0]  %s29, 256, %s31, [#allocation6], 128, 128, 8
    $region9: #{tpu_custom_call.1} parent=1 // pred_fallthru
      _
    // Predicated region
    $region10: #{tpu_custom_call.1} parent=1 // pred_check
      _
    $region11: #{tpu_custom_call.1} parent=1 // pred_check_branch
      %38 = sbr.rel (0) target = $region13
    $region12: #{tpu_custom_call.1} parent=1 // pred_region
      _
    $region13: #{tpu_custom_call.1} parent=1 // pred_fallthru
      _
    // Predicated region
    $region14: #{tpu_custom_call.1} parent=1 // pred_check
      _
    $region15: #{tpu_custom_call.1} parent=1 // pred_check_branch
      %40 = sbr.rel (0) target = $region17
    $region16: #{tpu_custom_call.1} parent=1 // pred_region
      _
    $region17: #{tpu_custom_call.1} parent=1 // pred_fallthru
      _
    // Predicated region
    $region18: #{tpu_custom_call.1} parent=1 // pred_check
      _
    $region19: #{tpu_custom_call.1} parent=1 // pred_check_branch
      %42 = sbr.rel (0) target = $region21
    $region20: #{tpu_custom_call.1} parent=1 // pred_region
      _
    $region21: #{tpu_custom_call.1} parent=1 // pred_fallthru
      _
    // Predicated region
    $region22: #{tpu_custom_call.1} parent=1 // pred_check
      _
    $region23: #{tpu_custom_call.1} parent=1 // pred_check_branch
      %44 = sbr.rel (0) target = $region25
    $region24: #{tpu_custom_call.1} parent=1 // pred_region
      %46 = dma.done [#allocation4], 128
    $region25: #{tpu_custom_call.1} parent=1 // pred_fallthru
      _
    // Predicated region
    $region26: #{tpu_custom_call.1} parent=1 // pred_check
      _
    $region27: #{tpu_custom_call.1} parent=1 // pred_check_branch
      %48 = sbr.rel (0) target = $region29
    $region28: #{tpu_custom_call.1} parent=1 // pred_region
      %50 = dma.done [#allocation6], 256
    $region29: #{tpu_custom_call.1} parent=1 // pred_fallthru
      _
    %v51 = vld [vmem:[#allocation3] sm:$0xff]
    %v52 = vld [vmem:[#allocation5] sm:$0xff]
    %v53 = vld [vmem:[#allocation5 + $0x8] sm:$0xff]
    %v54 = vld [vmem:[%s2] sm:$0x1]
    %v56 = vperm.slane %v54, 0
    %vm58 = vcmask 130048
    %v60 = vsel %vm58, %v51, 0
    %62 = vmatpush.msra.mxu0 0.0
    %63 = vmatpush.msra.mxu0 0.0
    %64 = vmatpush.msra.mxu0 0.0
    %65 = vmatpush.msra.mxu0 0.0
    %66 = vmatpush.msra.mxu0 0.0
    %67 = vmatpush.msra.mxu0 0.0
    %68 = vmatpush.msra.mxu0 0.0
    %69 = vmatpush.msra.mxu0 0.0
    %70 = vmatpush.msra.mxu0 0.0
    %71 = vmatpush.msra.mxu0 0.0
    %72 = vmatpush.msra.mxu0 0.0
    %73 = vmatpush.msra.mxu0 0.0
    %74 = vmatpush.msra.mxu0 0.0
    %75 = vmatpush.msra.mxu0 0.0
    %76 = vmatpush.msra.mxu0 %v53
    %77 = vmatpush.msra.mxu0 %v52
    %78 = vmatmul.f32.gmra.mxu0 %v60
    %v79 = vpop.f32.mrf.mxu0
    %v80 = vadd.f32 %v56, %v79
    %81 = vdwg.mxu0
    %v82 = vmax.f32 %v80, 0.0
    %v83 = vld [vmem:[%s3] sm:$0x1]
    %v85 = vperm.slane %v83, 0
    %v87 = vmul.f32 %v82, %v85
    %vm88 = vcmask 261120
    %v89 = vsel %vm88, %v87, 0.0
    %90 = vadd.xlane.f32.xlu0 %v89
    %v91 = vpop.xlane.xlu0 %90
    %s92 = sld [smem:[#allocation2]]
    %v93 = vstv %s92
    %v94 = vadd.f32 %v91, %v93
    %v95 = vxor.u32 %v94, 2147483648
    %v96 = vmul.f32 %v95, 1.442695
    %v97 = vpow.pop %v96
    %v98 = vadd.f32 %v97, 1.0
    %v99 = vrcp.pop %v98
    %v100 = vmul.f32 %v98, %v99
    %v101 = vsub.f32 1.0, %v100
    %v102 = vmul.f32 %v99, %v101
    %v103 = vadd.f32 %v99, %v102
    %vm104 = vweird.f32 %v98
    %vm105 = vweird.f32 %v99
    %vm106 = vmor %vm104, %vm105
    %v107 = vsel %vm106, %v99, %v103
    %v108 = vand.u32 2147483647, %v98
    %vm109 = vcmp.eq.f32.partialorder %v108, 8.507059e+37
    %v110 = vand.u32 %v98, 2147483648
    %v111 = vor.u32 1.1754944e-38, %v110
    %v112 = vsel %vm109, %v111, %v107
    %v113 = vmul.f32 1.0, %v112
    %vm114 = vcmask 7168
    %115 = vst.msk [vmem:[%s5] sm:$0xff] %vm114, %v113
    // Predicated region
    $region30: #{tpu_custom_call.1} parent=1 // pred_check
      _
    $region31: #{tpu_custom_call.1} parent=1 // pred_check_branch
      %117 = sbr.rel (0) target = $region33
    $region32: #{tpu_custom_call.1} parent=1 // pred_region
      _
    $region33: #{tpu_custom_call.1} parent=1 // pred_fallthru
      _
    // Predicated region
    $region34: #{tpu_custom_call.1} parent=1 // pred_check
      _
    $region35: #{tpu_custom_call.1} parent=1 // pred_check_branch
      %119 = sbr.rel (0) target = $region37
    $region36: #{tpu_custom_call.1} parent=1 // pred_region
      _
    $region37: #{tpu_custom_call.1} parent=1 // pred_fallthru
      _
    %120 = vsyncpa [#allocation4], 1
    %121 = vsyncpa [#allocation6], 1

</llo_original>
